<compile_context>
chip_gen: v7x
topology: tpu7x:2x2x1
jax: 0.10.0
libtpu: 0.0.40
codegen_flags: <defaults>
</compile_context>

<pallas_src>
import functools

import jax
import jax.numpy as jnp
from jax.experimental import pallas as pl
from jax.experimental.pallas import tpu as pltpu

VOCAB = 50
EMBED = 32
SEQ = 30            # MaxPool1d(3, stride=3, padding=1) -> 10, matching fc in_features 40*10
LPAD = 32           # per-example rows padded 30 -> 32 (full (8,128) sublane tiles)
CONV_C = 40
POOL_T = 10
FC_H = 64
OUT_DIM = 8
BATCH = 2
LANE = 128
VPAD = 56                 # per-tap block stride in fused weight (>= VOCAB+1, multiple of 8)
BIAS_ROW = 3 * VPAD       # always-hot row holding the tiled conv bias
KDIM = BIAS_ROW + 8       # 176: contraction dim of the fused embed+conv matmul


def cnn_kernel(ids_ref, wall_ref, mask_ref, wfc_ref, b2_ref, wfc2_ref, out_ref, *,
               apply_sigmoid):
    bl = ids_ref.shape[0]                  # b_tile * LPAD rows (batch folded into sublanes)
    bt = bl // LPAD
    TC = POOL_T * CONV_C

    # ---- Embedding + Conv1d(k=3,pad=1) + bias + 10x pool replication: ONE matmul ----
    # ids columns = (left, mid, right, bias) vocab positions with per-tap block offsets
    # pre-added in the wrapper; conv zero-padding / pad rows use a sentinel that lands
    # on an all-zero weight row.  The quad-hot lhs therefore selects
    #   W_left[id(l-1)] + W_mid[id(l)] + W_right[id(l+1)] + b_conv   in one MXU pass.
    ids = ids_ref[...]                                                # (bl, 4) int32
    pos = jax.lax.broadcasted_iota(jnp.int32, (bl, KDIM), 1)
    quad = ((pos == ids[:, 0:1]) | (pos == ids[:, 1:2]) |
            (pos == ids[:, 2:3]) | (pos == ids[:, 3:4])).astype(jnp.float32)
    conv = jnp.maximum(jnp.dot(quad, wall_ref[...],
                               preferred_element_type=jnp.float32), 0.0)   # (bl, 400)

    # ---- MaxPool1d(3, stride=3, pad=1): {0,1} window-membership mask multiply (valid
    # since post-ReLU >= 0), then one vectorized max over the 32 padded rows/example.
    masked = conv.reshape(bt, LPAD, TC) * mask_ref[...]
    pooled = jnp.max(masked, axis=1)                                   # (bt, 400)

    # ---- fc -> ReLU -> fc2 (+ optional sigmoid) ----
    # TODO(synk): Dropout(0.3) is train-only; inference forward is identity, so omitted.
    h = jnp.maximum(jnp.dot(pooled, wfc_ref[...],
                            preferred_element_type=jnp.float32)
                    + b2_ref[0:1, 0:FC_H], 0.0)                        # (bt, 64)
    out = jnp.dot(h, wfc2_ref[...],
                  preferred_element_type=jnp.float32) + b2_ref[1:2, :]  # (bt, 128)
    if apply_sigmoid:
        out = jax.nn.sigmoid(out)
    out_ref[...] = out.astype(out_ref.dtype)


def cnn_forward(x_in, params, apply_sigmoid=False, b_tile=None):
    emb_table, w_conv_pt, b_conv, w_fc_pt, b_fc, w_fc2_pt, b_fc2 = params
    B, L = x_in.shape
    assert L == SEQ
    if b_tile is None:
        b_tile = B        # single grid step (best on v5e/v6e); on v7x only use
                          # b_tile = B // 2 once B >= 16 so tiles stay 8-aligned and
                          # per-core work amortizes the ~0.35us/step overhead.
    assert B % b_tile == 0
    assert b_tile == B or b_tile % 8 == 0, "b_tile < B requires 8-aligned batch tiles"
    nb = B // b_tile
    TC = POOL_T * CONV_C

    # ---- id layout (pure int plumbing): pad each example 30 -> 32 rows, build the
    # (left, mid, right, bias) position columns with per-tap offsets pre-added.
    # Sentinel VOCAB marks conv zero padding / pad rows -> all-zero weight row.
    # TODO(synk): ids outside [0, VOCAB) are not range-checked (PyTorch would raise).
    ids = x_in.astype(jnp.int32)
    s1 = jnp.full((B, 1), VOCAB, jnp.int32)
    s2 = jnp.full((B, 2), VOCAB, jnp.int32)
    left = jnp.concatenate([s1, ids[:, :L - 1], s2], axis=1)             # id[l-1]
    mid = jnp.concatenate([ids, s2], axis=1)                             # id[l]
    right = jnp.concatenate([ids[:, 1:], s1, s2], axis=1)                # id[l+1]
    ids4 = jnp.stack([left, mid + VPAD, right + 2 * VPAD,
                      jnp.full((B, LPAD), BIAS_ROW, jnp.int32)], axis=-1)
    ids4 = ids4.reshape(B * LPAD, 4)                                     # (B*32, 4)

    # ---- fused (embedding @ conv tap) weights, tiled POOL_T x along lanes, conv bias
    # folded in as the always-hot row.  One-time O(vocab) wrapper-side prep.
    w_all = jnp.zeros((KDIM, TC), jnp.float32)
    for k in range(3):
        tap = jnp.tile(emb_table @ w_conv_pt[:, :, k].T, (1, POOL_T))    # (50, 400)
        w_all = w_all.at[k * VPAD:k * VPAD + VOCAB].set(tap)
    w_all = w_all.at[BIAS_ROW].set(jnp.tile(b_conv, POOL_T))

    # ---- pool window-membership mask: padded row l belongs to window t iff |l-3t|<=1
    # (rows 29..31 never belong, matching PyTorch's 10 windows over length 30).
    l_idx = jnp.arange(LPAD)[:, None]
    t_idx = (jnp.arange(TC) // CONV_C)[None, :]
    pool_mask = (jnp.abs(l_idx - 3 * t_idx) <= 1).astype(jnp.float32)    # (32, 400)

    # ---- fc weight reordered from PyTorch's (c, t) flatten to the kernel's (t, c)
    # columns; fc2 weight + both biases lane-padded to 128 for an unmasked final store.
    w_fc = (w_fc_pt.T.reshape(CONV_C, POOL_T, FC_H)
            .transpose(1, 0, 2).reshape(TC, FC_H))                        # (400, 64)
    w_fc2 = jnp.zeros((FC_H, LANE), jnp.float32).at[:, :OUT_DIM].set(w_fc2_pt.T)
    b2 = (jnp.zeros((2, LANE), jnp.float32)
          .at[0, :FC_H].set(b_fc).at[1, :OUT_DIM].set(b_fc2))

    kernel = functools.partial(cnn_kernel, apply_sigmoid=apply_sigmoid)
    out_pad = pl.pallas_call(
        kernel,
        out_shape=jax.ShapeDtypeStruct((B, LANE), jnp.float32),
        grid=(nb,),
        in_specs=[
            pl.BlockSpec((b_tile * LPAD, 4), lambda i: (i, 0)),
            pl.BlockSpec((KDIM, TC), lambda i: (0, 0)),
            pl.BlockSpec((LPAD, TC), lambda i: (0, 0)),
            pl.BlockSpec((TC, FC_H), lambda i: (0, 0)),
            pl.BlockSpec((2, LANE), lambda i: (0, 0)),
            pl.BlockSpec((FC_H, LANE), lambda i: (0, 0)),
        ],
        out_specs=pl.BlockSpec((b_tile, LANE), lambda i: (i, 0)),
        compiler_params=pltpu.CompilerParams(dimension_semantics=("parallel",)),
    )(ids4, w_all, pool_mask, w_fc, b2, w_fc2)
    return out_pad[:, :OUT_DIM]


def ref_forward(x_in, params, apply_sigmoid=False):
    """Pure-JAX reference with exact PyTorch semantics (NCW conv, (C,T) flatten)."""
    emb_table, w_conv_pt, b_conv, w_fc_pt, b_fc, w_fc2_pt, b_fc2 = params
    emb = jnp.take(emb_table, x_in, axis=0)            # (B, L, E)
    x = jnp.transpose(emb, (0, 2, 1))                  # (B, E, L)
    L = x.shape[-1]
    xp = jnp.pad(x, ((0, 0), (0, 0), (1, 1)))
    conv = b_conv[None, :, None]
    for k in range(3):
        conv = conv + jnp.einsum('bel,oe->bol', xp[:, :, k:k + L], w_conv_pt[:, :, k])
    conv = jnp.maximum(conv, 0.0)                      # (B, 40, L)
    cp = jnp.pad(conv, ((0, 0), (0, 0), (1, 1)), constant_values=-jnp.inf)
    pooled = cp[:, :, 0:3 * POOL_T].reshape(x.shape[0], CONV_C, POOL_T, 3).max(axis=-1)
    flat = pooled.reshape(x.shape[0], CONV_C * POOL_T)  # (B, 400), (C,T) order
    h = jnp.maximum(flat @ w_fc_pt.T + b_fc, 0.0)
    out = h @ w_fc2_pt.T + b_fc2
    if apply_sigmoid:
        out = jax.nn.sigmoid(out)
    return out


def init_params(key):
    ks = jax.random.split(key, 7)
    emb_table = jax.random.normal(ks[0], (VOCAB, EMBED), jnp.float32) * 0.1
    w_conv_pt = jax.random.normal(ks[1], (CONV_C, EMBED, 3), jnp.float32) * 0.1
    b_conv = jax.random.normal(ks[2], (CONV_C,), jnp.float32) * 0.1
    w_fc_pt = jax.random.normal(ks[3], (FC_H, CONV_C * POOL_T), jnp.float32) * 0.05
    b_fc = jax.random.normal(ks[4], (FC_H,), jnp.float32) * 0.05
    w_fc2_pt = jax.random.normal(ks[5], (OUT_DIM, FC_H), jnp.float32) * 0.05
    b_fc2 = jax.random.normal(ks[6], (OUT_DIM,), jnp.float32) * 0.05
    return (emb_table, w_conv_pt, b_conv, w_fc_pt, b_fc, w_fc2_pt, b_fc2)


if __name__ == "__main__":
    key = jax.random.PRNGKey(0)
    kp, kx = jax.random.split(key)
    params = init_params(kp)
    x_in = jax.random.randint(kx, (BATCH, SEQ), 0, VOCAB, dtype=jnp.int32)

    out = jax.block_until_ready(cnn_forward(x_in, params, apply_sigmoid=False))
    out_sig = jax.block_until_ready(cnn_forward(x_in, params, apply_sigmoid=True))

    ref = ref_forward(x_in, params, apply_sigmoid=False)
    ref_sig = ref_forward(x_in, params, apply_sigmoid=True)

    assert out.shape == (BATCH, OUT_DIM)
    assert jnp.allclose(out, ref, atol=1e-4, rtol=1e-4), (out, ref)
    assert jnp.allclose(out_sig, ref_sig, atol=1e-4, rtol=1e-4)
    print("KERNEL_OK")
</pallas_src>

<mosaic_0001>
module attributes {stable_mosaic.version = 11 : i64} {
  func.func @cnn_kernel(%arg0: i32, %arg1: memref<64x4xi32, #tpu.memory_space<vmem>>, %arg2: memref<176x400xf32, #tpu.memory_space<vmem>>, %arg3: memref<32x400xf32, #tpu.memory_space<vmem>>, %arg4: memref<400x64xf32, #tpu.memory_space<vmem>>, %arg5: memref<2x128xf32, #tpu.memory_space<vmem>>, %arg6: memref<64x128xf32, #tpu.memory_space<vmem>>, %arg7: memref<2x128xf32, #tpu.memory_space<vmem>>) attributes {dimension_semantics = [#tpu.dimension_semantics<parallel>], iteration_bounds = array<i64: 1>, scalar_prefetch = 0 : i64, scratch_operands = 0 : i64, tpu.core_type = #tpu.core_type<tc>, window_params = [{transform_indices = @transform_0, window_bounds = array<i64: 64, 4>}, {pipeline_mode = #tpu.pipeline_mode<synchronous>, transform_indices = @transform_1, window_bounds = array<i64: 176, 400>}, {pipeline_mode = #tpu.pipeline_mode<synchronous>, transform_indices = @transform_2, window_bounds = array<i64: 32, 400>}, {pipeline_mode = #tpu.pipeline_mode<synchronous>, transform_indices = @transform_3, window_bounds = array<i64: 400, 64>}, {pipeline_mode = #tpu.pipeline_mode<synchronous>, transform_indices = @transform_4, window_bounds = array<i64: 2, 128>}, {pipeline_mode = #tpu.pipeline_mode<synchronous>, transform_indices = @transform_5, window_bounds = array<i64: 64, 128>}, {transform_indices = @transform_6, window_bounds = array<i64: 2, 128>}]} {
    %c0 = arith.constant 0 : index
    %c0_0 = arith.constant 0 : index
    %0 = vector.load %arg1[%c0, %c0_0] : memref<64x4xi32, #tpu.memory_space<vmem>>, vector<64x4xi32>
    %1 = tpu.iota {dimensions = array<i32: 1>} : vector<64x176xi32>
    %2 = vector.extract_strided_slice %0 {offsets = [0, 0], sizes = [64, 1], strides = [1, 1]} : vector<64x4xi32> to vector<64x1xi32>
    %3 = vector.broadcast %2 : vector<64x1xi32> to vector<64x176xi32>
    %4 = arith.cmpi eq, %1, %3 : vector<64x176xi32>
    %5 = vector.extract_strided_slice %0 {offsets = [0, 1], sizes = [64, 1], strides = [1, 1]} : vector<64x4xi32> to vector<64x1xi32>
    %6 = vector.broadcast %5 : vector<64x1xi32> to vector<64x176xi32>
    %7 = arith.cmpi eq, %1, %6 : vector<64x176xi32>
    %8 = arith.ori %4, %7 : vector<64x176xi1>
    %9 = vector.extract_strided_slice %0 {offsets = [0, 2], sizes = [64, 1], strides = [1, 1]} : vector<64x4xi32> to vector<64x1xi32>
    %10 = vector.broadcast %9 : vector<64x1xi32> to vector<64x176xi32>
    %11 = arith.cmpi eq, %1, %10 : vector<64x176xi32>
    %12 = arith.ori %8, %11 : vector<64x176xi1>
    %13 = vector.extract_strided_slice %0 {offsets = [0, 3], sizes = [64, 1], strides = [1, 1]} : vector<64x4xi32> to vector<64x1xi32>
    %14 = vector.broadcast %13 : vector<64x1xi32> to vector<64x176xi32>
    %15 = arith.cmpi eq, %1, %14 : vector<64x176xi32>
    %16 = arith.ori %12, %15 : vector<64x176xi1>
    %17 = arith.extui %16 : vector<64x176xi1> to vector<64x176xi32>
    %18 = arith.sitofp %17 : vector<64x176xi32> to vector<64x176xf32>
    %c0_1 = arith.constant 0 : index
    %c0_2 = arith.constant 0 : index
    %19 = vector.load %arg2[%c0_1, %c0_2] : memref<176x400xf32, #tpu.memory_space<vmem>>, vector<176x400xf32>
    %cst = arith.constant dense<0.000000e+00> : vector<64x400xf32>
    %20 = tpu.matmul %18, %19, %cst {dimension_numbers = #tpu.dot_dimension_numbers<[1], [0], [0], [1], [0, 0, 1, 1], [], []>} : vector<64x176xf32>, vector<176x400xf32>, vector<64x400xf32> -> vector<64x400xf32>
    %cst_3 = arith.constant 0.000000e+00 : f32
    %21 = vector.broadcast %cst_3 : f32 to vector<64x400xf32>
    %22 = arith.maximumf %20, %21 : vector<64x400xf32>
    %23 = vector.shape_cast %22 : vector<64x400xf32> to vector<2x32x400xf32>
    %c0_4 = arith.constant 0 : index
    %c0_5 = arith.constant 0 : index
    %24 = vector.load %arg3[%c0_4, %c0_5] : memref<32x400xf32, #tpu.memory_space<vmem>>, vector<32x400xf32>
    %25 = vector.shape_cast %24 : vector<32x400xf32> to vector<1x32x400xf32>
    %26 = vector.broadcast %25 : vector<1x32x400xf32> to vector<2x32x400xf32>
    %27 = arith.mulf %23, %26 : vector<2x32x400xf32>
    %cst_6 = arith.constant dense<0xFF800000> : vector<2x400xf32>
    %28 = vector.multi_reduction <maximumf>, %27, %cst_6 [1] : vector<2x32x400xf32> to vector<2x400xf32>
    %c0_7 = arith.constant 0 : index
    %c0_8 = arith.constant 0 : index
    %29 = vector.load %arg4[%c0_7, %c0_8] : memref<400x64xf32, #tpu.memory_space<vmem>>, vector<400x64xf32>
    %cst_9 = arith.constant dense<0.000000e+00> : vector<2x64xf32>
    %30 = tpu.matmul %28, %29, %cst_9 {dimension_numbers = #tpu.dot_dimension_numbers<[1], [0], [0], [1], [0, 0, 1, 1], [], []>} : vector<2x400xf32>, vector<400x64xf32>, vector<2x64xf32> -> vector<2x64xf32>
    %c0_10 = arith.constant 0 : index
    %c0_11 = arith.constant 0 : index
    %31 = vector.load %arg5[%c0_10, %c0_11] : memref<2x128xf32, #tpu.memory_space<vmem>>, vector<1x64xf32>
    %32 = vector.broadcast %31 : vector<1x64xf32> to vector<2x64xf32>
    %33 = arith.addf %30, %32 : vector<2x64xf32>
    %cst_12 = arith.constant 0.000000e+00 : f32
    %34 = vector.broadcast %cst_12 : f32 to vector<2x64xf32>
    %35 = arith.maximumf %33, %34 : vector<2x64xf32>
    %c0_13 = arith.constant 0 : index
    %c0_14 = arith.constant 0 : index
    %36 = vector.load %arg6[%c0_13, %c0_14] : memref<64x128xf32, #tpu.memory_space<vmem>>, vector<64x128xf32>
    %cst_15 = arith.constant dense<0.000000e+00> : vector<2x128xf32>
    %37 = tpu.matmul %35, %36, %cst_15 {dimension_numbers = #tpu.dot_dimension_numbers<[1], [0], [0], [1], [0, 0, 1, 1], [], []>} : vector<2x64xf32>, vector<64x128xf32>, vector<2x128xf32> -> vector<2x128xf32>
    %c1 = arith.constant 1 : index
    %c0_16 = arith.constant 0 : index
    %38 = vector.load %arg5[%c1, %c0_16] : memref<2x128xf32, #tpu.memory_space<vmem>>, vector<1x128xf32>
    %39 = vector.broadcast %38 : vector<1x128xf32> to vector<2x128xf32>
    %40 = arith.addf %37, %39 : vector<2x128xf32>
    %c0_17 = arith.constant 0 : index
    %c0_18 = arith.constant 0 : index
    %41 = vector.load %arg7[%c0_17, %c0_18] : memref<2x128xf32, #tpu.memory_space<vmem>>, vector<2x128xf32>
    tpu.vector_store %arg7[%c0_17, %c0_18], %40 {strides = array<i32>} : memref<2x128xf32, #tpu.memory_space<vmem>>, vector<2x128xf32>,
    return
  }
  func.func @transform_0(%arg0: i32) -> (i32, i32) {
    %c0_i32 = arith.constant 0 : i32
    %c0_i32_0 = arith.constant 0 : i32
    return %arg0, %c0_i32 : i32, i32
  }
  func.func @transform_1(%arg0: i32) -> (i32, i32) {
    %c0_i32 = arith.constant 0 : i32
    %c0_i32_0 = arith.constant 0 : i32
    %c0_i32_1 = arith.constant 0 : i32
    return %c0_i32, %c0_i32_0 : i32, i32
  }
  func.func @transform_2(%arg0: i32) -> (i32, i32) {
    %c0_i32 = arith.constant 0 : i32
    %c0_i32_0 = arith.constant 0 : i32
    %c0_i32_1 = arith.constant 0 : i32
    return %c0_i32, %c0_i32_0 : i32, i32
  }
  func.func @transform_3(%arg0: i32) -> (i32, i32) {
    %c0_i32 = arith.constant 0 : i32
    %c0_i32_0 = arith.constant 0 : i32
    %c0_i32_1 = arith.constant 0 : i32
    return %c0_i32, %c0_i32_0 : i32, i32
  }
  func.func @transform_4(%arg0: i32) -> (i32, i32) {
    %c0_i32 = arith.constant 0 : i32
    %c0_i32_0 = arith.constant 0 : i32
    %c0_i32_1 = arith.constant 0 : i32
    return %c0_i32, %c0_i32_0 : i32, i32
  }
  func.func @transform_5(%arg0: i32) -> (i32, i32) {
    %c0_i32 = arith.constant 0 : i32
    %c0_i32_0 = arith.constant 0 : i32
    %c0_i32_1 = arith.constant 0 : i32
    return %c0_i32, %c0_i32_0 : i32, i32
  }
  func.func @transform_6(%arg0: i32) -> (i32, i32) {
    %c0_i32 = arith.constant 0 : i32
    %c0_i32_0 = arith.constant 0 : i32
    return %arg0, %c0_i32 : i32, i32
  }
}

</mosaic_0001>

<llo_original>
// kernel: tpu_custom_call.1
$region0: #{tpu_custom_call.1}
  #allocation0 [shape = 'u32[]', space=smem, size = 0x4, offset = 0x4, fixed_abs, tag = 'smem constant byte address 0x4 - core index']
  #allocation1 [shape = 'u32[144,128]{1,0:T(1,128)}', space=vmem, size = 0x12000, scoped, tag = 'internal scratch']
  %s0 = inlined_call_operand.vmem [shape: s32[64,4], index: 0, kind: input, shape index: {}]
  %s1 = inlined_call_operand.vmem [shape: f32[176,400], index: 1, kind: input, shape index: {}]
  %s2 = inlined_call_operand.hbm [shape: f32[32,400], index: 2, kind: input, shape index: {}]
  %s3 = inlined_call_operand.vmem [shape: f32[400,64], index: 3, kind: input, shape index: {}]
  %s4 = inlined_call_operand.vmem [shape: f32[2,128], index: 4, kind: input, shape index: {}]
  %s5 = inlined_call_operand.hbm [shape: f32[64,128], index: 5, kind: input, shape index: {}]
  %s6 = inlined_call_operand.hbm [shape: f32[2,128], index: 6, kind: output, shape index: {}]
  %s7 = sld [smem:[#allocation0]]
  $region42: #{tpu_custom_call.1} parent=0
    _
  %s9 = ssub.s32 1, %s7
  %s10 = scalar_select 0, %s9, %s7
  $region1: #{tpu_custom_call.1} parent=0
    #allocation2 [shape = 'u8[65536]{0}', space=vmem, size = 0x10000, scoped, tag = 'input window, operand 2, single buffered']
    #allocation3 [shape = 's32[1]{0}', space=sflag, size = 0x4, scoped, tag = 'scoped memory for tpu_custom_call.1']
    #allocation4 [shape = 's32[1]{0}', space=sflag, size = 0x4, scoped, tag = 'scoped memory for tpu_custom_call.1']
    #allocation5 [shape = 'u8[32768]{0}', space=vmem, size = 0x8000, scoped, tag = 'input window, operand 5, single buffered']
    #allocation6 [shape = 's32[1]{0}', space=sflag, size = 0x4, scoped, tag = 'scoped memory for tpu_custom_call.1']
    #allocation7 [shape = 'u8[1024]{0}', space=vmem, size = 0x400, scoped, tag = 'output window, operand 0, single buffered']
    %11 = vsyncpa [#allocation3], 0
    %12 = vsyncpa [#allocation6], 0
    %13 = vsyncpa [#allocation4], 0
    // Predicated region
    $region2: #{tpu_custom_call.1} parent=1 // pred_check
      _
    $region3: #{tpu_custom_call.1} parent=1 // pred_check_branch
      %15 = sbr.rel (0) target = $region5
    $region4: #{tpu_custom_call.1} parent=1 // pred_region
      _
    $region5: #{tpu_custom_call.1} parent=1 // pred_fallthru
      _
    // Predicated region
    $region6: #{tpu_custom_call.1} parent=1 // pred_check
      _
    $region7: #{tpu_custom_call.1} parent=1 // pred_check_branch
      %17 = sbr.rel (0) target = $region9
    $region8: #{tpu_custom_call.1} parent=1 // pred_region
      _
    $region9: #{tpu_custom_call.1} parent=1 // pred_fallthru
      _
    // Predicated region
    $region10: #{tpu_custom_call.1} parent=1 // pred_check
      _
    $region11: #{tpu_custom_call.1} parent=1 // pred_check_branch
      %19 = sbr.rel (0) target = $region13
    $region12: #{tpu_custom_call.1} parent=1 // pred_region
      %s21 = ssub.s32 2048, 2048
      %22 = vsyncadd [#allocation3], %s21
      %s23 = sshll.u32 [#allocation2], 4
      %s24 = int_to_ptr.vmem [resolvable:$true] %s23
      %29 = dma.hbm_to_vmem [thread:$0]  %s2, 2048, %s24, [#allocation3], 512, 512, 32
    $region13: #{tpu_custom_call.1} parent=1 // pred_fallthru
      _
    // Predicated region
    $region14: #{tpu_custom_call.1} parent=1 // pred_check
      _
    $region15: #{tpu_custom_call.1} parent=1 // pred_check_branch
      %31 = sbr.rel (0) target = $region17
    $region16: #{tpu_custom_call.1} parent=1 // pred_region
      _
    $region17: #{tpu_custom_call.1} parent=1 // pred_fallthru
      _
    // Predicated region
    $region18: #{tpu_custom_call.1} parent=1 // pred_check
      _
    $region19: #{tpu_custom_call.1} parent=1 // pred_check_branch
      %33 = sbr.rel (0) target = $region21
    $region20: #{tpu_custom_call.1} parent=1 // pred_region
      _
    $region21: #{tpu_custom_call.1} parent=1 // pred_fallthru
      _
    // Predicated region
    $region22: #{tpu_custom_call.1} parent=1 // pred_check
      _
    $region23: #{tpu_custom_call.1} parent=1 // pred_check_branch
      %35 = sbr.rel (0) target = $region25
    $region24: #{tpu_custom_call.1} parent=1 // pred_region
      %s37 = ssub.s32 1024, 1024
      %38 = vsyncadd [#allocation6], %s37
      %s39 = sshll.u32 [#allocation5], 4
      %s40 = int_to_ptr.vmem [resolvable:$true] %s39
      %45 = dma.hbm_to_vmem [thread:$0]  %s5, 1024, %s40, [#allocation6], 128, 128, 8
    $region25: #{tpu_custom_call.1} parent=1 // pred_fallthru
      _
    // Predicated region
    $region26: #{tpu_custom_call.1} parent=1 // pred_check
      _
    $region27: #{tpu_custom_call.1} parent=1 // pred_check_branch
      %47 = sbr.rel (0) target = $region29
    $region28: #{tpu_custom_call.1} parent=1 // pred_region
      %48 = dma.done [#allocation3], 2048
    $region29: #{tpu_custom_call.1} parent=1 // pred_fallthru
      _
    // Predicated region
    $region30: #{tpu_custom_call.1} parent=1 // pred_check
      _
    $region31: #{tpu_custom_call.1} parent=1 // pred_check_branch
      %50 = sbr.rel (0) target = $region33
    $region32: #{tpu_custom_call.1} parent=1 // pred_region
      %51 = dma.done [#allocation6], 1024
    $region33: #{tpu_custom_call.1} parent=1 // pred_fallthru
      _
    %v52 = vld [vmem:[%s0] sm:$0xff]
    %v53 = vld [vmem:[%s0 + $0x8] sm:$0xff]
    %v54 = vld [vmem:[%s0 + $0x10] sm:$0xff]
    %v55 = vld [vmem:[%s0 + $0x18] sm:$0xff]
    %v56 = vld [vmem:[%s0 + $0x20] sm:$0xff]
    %v57 = vld [vmem:[%s0 + $0x28] sm:$0xff]
    %v58 = vld [vmem:[%s0 + $0x30] sm:$0xff]
    %v59 = vld [vmem:[%s0 + $0x38] sm:$0xff]
    %v60 = vlaneseq
    %v61 = vand.u32 %v60, 127
    %v62 = vadd.s32 %v61, 128
    %63 = vset.pattern.permute.xlu0 0
    %64 = vperm.xlu0 %63, %v52
    %v65 = vpop.permute.xlu0 %64
    %66 = vset.pattern.permute.xlu0 0
    %67 = vperm.xlu0 %66, %v53
    %v68 = vpop.permute.xlu0 %67
    %69 = vset.pattern.permute.xlu0 0
    %70 = vperm.xlu0 %69, %v54
    %v71 = vpop.permute.xlu0 %70
    %72 = vset.pattern.permute.xlu0 0
    %73 = vperm.xlu0 %72, %v55
    %v74 = vpop.permute.xlu0 %73
    %75 = vset.pattern.permute.xlu0 0
    %76 = vperm.xlu0 %75, %v56
    %v77 = vpop.permute.xlu0 %76
    %78 = vset.pattern.permute.xlu0 0
    %79 = vperm.xlu0 %78, %v57
    %v80 = vpop.permute.xlu0 %79
    %81 = vset.pattern.permute.xlu0 0
    %82 = vperm.xlu0 %81, %v58
    %v83 = vpop.permute.xlu0 %82
    %84 = vset.pattern.permute.xlu0 0
    %85 = vperm.xlu0 %84, %v59
    %v86 = vpop.permute.xlu0 %85
    %vm87 = vcmp.eq.s32.totalorder %v61, %v65
    %vm88 = vcmp.eq.s32.totalorder %v62, %v65
    %vm89 = vcmp.eq.s32.totalorder %v61, %v68
    %vm90 = vcmp.eq.s32.totalorder %v62, %v68
    %vm91 = vcmp.eq.s32.totalorder %v61, %v71
    %vm92 = vcmp.eq.s32.totalorder %v62, %v71
    %vm93 = vcmp.eq.s32.totalorder %v61, %v74
    %vm94 = vcmp.eq.s32.totalorder %v62, %v74
    %vm95 = vcmp.eq.s32.totalorder %v61, %v77
    %vm96 = vcmp.eq.s32.totalorder %v62, %v77
    %vm97 = vcmp.eq.s32.totalorder %v61, %v80
    %vm98 = vcmp.eq.s32.totalorder %v62, %v80
    %vm99 = vcmp.eq.s32.totalorder %v61, %v83
    %vm100 = vcmp.eq.s32.totalorder %v62, %v83
    %vm101 = vcmp.eq.s32.totalorder %v61, %v86
    %vm102 = vcmp.eq.s32.totalorder %v62, %v86
    %103 = vset.pattern.permute.xlu0 1
    %104 = vperm.xlu0 %103, %v52
    %v105 = vpop.permute.xlu0 %104
    %106 = vset.pattern.permute.xlu0 1
    %107 = vperm.xlu0 %106, %v53
    %v108 = vpop.permute.xlu0 %107
    %109 = vset.pattern.permute.xlu0 1
    %110 = vperm.xlu0 %109, %v54
    %v111 = vpop.permute.xlu0 %110
    %112 = vset.pattern.permute.xlu0 1
    %113 = vperm.xlu0 %112, %v55
    %v114 = vpop.permute.xlu0 %113
    %115 = vset.pattern.permute.xlu0 1
    %116 = vperm.xlu0 %115, %v56
    %v117 = vpop.permute.xlu0 %116
    %118 = vset.pattern.permute.xlu0 1
    %119 = vperm.xlu0 %118, %v57
    %v120 = vpop.permute.xlu0 %119
    %121 = vset.pattern.permute.xlu0 1
    %122 = vperm.xlu0 %121, %v58
    %v123 = vpop.permute.xlu0 %122
    %124 = vset.pattern.permute.xlu0 1
    %125 = vperm.xlu0 %124, %v59
    %v126 = vpop.permute.xlu0 %125
    %vm127 = vcmp.eq.s32.totalorder %v61, %v105
    %vm128 = vcmp.eq.s32.totalorder %v62, %v105
    %vm129 = vcmp.eq.s32.totalorder %v61, %v108
    %vm130 = vcmp.eq.s32.totalorder %v62, %v108
    %vm131 = vcmp.eq.s32.totalorder %v61, %v111
    %vm132 = vcmp.eq.s32.totalorder %v62, %v111
    %vm133 = vcmp.eq.s32.totalorder %v61, %v114
    %vm134 = vcmp.eq.s32.totalorder %v62, %v114
    %vm135 = vcmp.eq.s32.totalorder %v61, %v117
    %vm136 = vcmp.eq.s32.totalorder %v62, %v117
    %vm137 = vcmp.eq.s32.totalorder %v61, %v120
    %vm138 = vcmp.eq.s32.totalorder %v62, %v120
    %vm139 = vcmp.eq.s32.totalorder %v61, %v123
    %vm140 = vcmp.eq.s32.totalorder %v62, %v123
    %vm141 = vcmp.eq.s32.totalorder %v61, %v126
    %vm142 = vcmp.eq.s32.totalorder %v62, %v126
    %vm143 = vmor %vm87, %vm127
    %vm144 = vmor %vm88, %vm128
    %vm145 = vmor %vm89, %vm129
    %vm146 = vmor %vm90, %vm130
    %vm147 = vmor %vm91, %vm131
    %vm148 = vmor %vm92, %vm132
    %vm149 = vmor %vm93, %vm133
    %vm150 = vmor %vm94, %vm134
    %vm151 = vmor %vm95, %vm135
    %vm152 = vmor %vm96, %vm136
    %vm153 = vmor %vm97, %vm137
    %vm154 = vmor %vm98, %vm138
    %vm155 = vmor %vm99, %vm139
    %vm156 = vmor %vm100, %vm140
    %vm157 = vmor %vm101, %vm141
    %vm158 = vmor %vm102, %vm142
    %159 = vset.pattern.permute.xlu0 2
    %160 = vperm.xlu0 %159, %v52
    %v161 = vpop.permute.xlu0 %160
    %162 = vset.pattern.permute.xlu0 2
    %163 = vperm.xlu0 %162, %v53
    %v164 = vpop.permute.xlu0 %163
    %165 = vset.pattern.permute.xlu0 2
    %166 = vperm.xlu0 %165, %v54
    %v167 = vpop.permute.xlu0 %166
    %168 = vset.pattern.permute.xlu0 2
    %169 = vperm.xlu0 %168, %v55
    %v170 = vpop.permute.xlu0 %169
    %171 = vset.pattern.permute.xlu0 2
    %172 = vperm.xlu0 %171, %v56
    %v173 = vpop.permute.xlu0 %172
    %174 = vset.pattern.permute.xlu0 2
    %175 = vperm.xlu0 %174, %v57
    %v176 = vpop.permute.xlu0 %175
    %177 = vset.pattern.permute.xlu0 2
    %178 = vperm.xlu0 %177, %v58
    %v179 = vpop.permute.xlu0 %178
    %180 = vset.pattern.permute.xlu0 2
    %181 = vperm.xlu0 %180, %v59
    %v182 = vpop.permute.xlu0 %181
    %vm183 = vcmp.eq.s32.totalorder %v61, %v161
    %vm184 = vcmp.eq.s32.totalorder %v62, %v161
    %vm185 = vcmp.eq.s32.totalorder %v61, %v164
    %vm186 = vcmp.eq.s32.totalorder %v62, %v164
    %vm187 = vcmp.eq.s32.totalorder %v61, %v167
    %vm188 = vcmp.eq.s32.totalorder %v62, %v167
    %vm189 = vcmp.eq.s32.totalorder %v61, %v170
    %vm190 = vcmp.eq.s32.totalorder %v62, %v170
    %vm191 = vcmp.eq.s32.totalorder %v61, %v173
    %vm192 = vcmp.eq.s32.totalorder %v62, %v173
    %vm193 = vcmp.eq.s32.totalorder %v61, %v176
    %vm194 = vcmp.eq.s32.totalorder %v62, %v176
    %vm195 = vcmp.eq.s32.totalorder %v61, %v179
    %vm196 = vcmp.eq.s32.totalorder %v62, %v179
    %vm197 = vcmp.eq.s32.totalorder %v61, %v182
    %vm198 = vcmp.eq.s32.totalorder %v62, %v182
    %vm199 = vmor %vm143, %vm183
    %vm200 = vmor %vm144, %vm184
    %vm201 = vmor %vm145, %vm185
    %vm202 = vmor %vm146, %vm186
    %vm203 = vmor %vm147, %vm187
    %vm204 = vmor %vm148, %vm188
    %vm205 = vmor %vm149, %vm189
    %vm206 = vmor %vm150, %vm190
    %vm207 = vmor %vm151, %vm191
    %vm208 = vmor %vm152, %vm192
    %vm209 = vmor %vm153, %vm193
    %vm210 = vmor %vm154, %vm194
    %vm211 = vmor %vm155, %vm195
    %vm212 = vmor %vm156, %vm196
    %vm213 = vmor %vm157, %vm197
    %vm214 = vmor %vm158, %vm198
    %215 = vset.pattern.permute.xlu0 3
    %216 = vperm.xlu0 %215, %v52
    %v217 = vpop.permute.xlu0 %216
    %218 = vset.pattern.permute.xlu0 3
    %219 = vperm.xlu0 %218, %v53
    %v220 = vpop.permute.xlu0 %219
    %221 = vset.pattern.permute.xlu0 3
    %222 = vperm.xlu0 %221, %v54
    %v223 = vpop.permute.xlu0 %222
    %224 = vset.pattern.permute.xlu0 3
    %225 = vperm.xlu0 %224, %v55
    %v226 = vpop.permute.xlu0 %225
    %227 = vset.pattern.permute.xlu0 3
    %228 = vperm.xlu0 %227, %v56
    %v229 = vpop.permute.xlu0 %228
    %230 = vset.pattern.permute.xlu0 3
    %231 = vperm.xlu0 %230, %v57
    %v232 = vpop.permute.xlu0 %231
    %233 = vset.pattern.permute.xlu0 3
    %234 = vperm.xlu0 %233, %v58
    %v235 = vpop.permute.xlu0 %234
    %236 = vset.pattern.permute.xlu0 3
    %237 = vperm.xlu0 %236, %v59
    %v238 = vpop.permute.xlu0 %237
    %vm239 = vcmp.eq.s32.totalorder %v61, %v217
    %vm240 = vcmp.eq.s32.totalorder %v62, %v217
    %vm241 = vcmp.eq.s32.totalorder %v61, %v220
    %vm242 = vcmp.eq.s32.totalorder %v62, %v220
    %vm243 = vcmp.eq.s32.totalorder %v61, %v223
    %vm244 = vcmp.eq.s32.totalorder %v62, %v223
    %vm245 = vcmp.eq.s32.totalorder %v61, %v226
    %vm246 = vcmp.eq.s32.totalorder %v62, %v226
    %vm247 = vcmp.eq.s32.totalorder %v61, %v229
    %vm248 = vcmp.eq.s32.totalorder %v62, %v229
    %vm249 = vcmp.eq.s32.totalorder %v61, %v232
    %vm250 = vcmp.eq.s32.totalorder %v62, %v232
    %vm251 = vcmp.eq.s32.totalorder %v61, %v235
    %vm252 = vcmp.eq.s32.totalorder %v62, %v235
    %vm253 = vcmp.eq.s32.totalorder %v61, %v238
    %vm254 = vcmp.eq.s32.totalorder %v62, %v238
    %vm255 = vmor %vm199, %vm239
    %vm256 = vmor %vm200, %vm240
    %vm257 = vmor %vm201, %vm241
    %vm258 = vmor %vm202, %vm242
    %vm259 = vmor %vm203, %vm243
    %vm260 = vmor %vm204, %vm244
    %vm261 = vmor %vm205, %vm245
    %vm262 = vmor %vm206, %vm246
    %vm263 = vmor %vm207, %vm247
    %vm264 = vmor %vm208, %vm248
    %vm265 = vmor %vm209, %vm249
    %vm266 = vmor %vm210, %vm250
    %vm267 = vmor %vm211, %vm251
    %vm268 = vmor %vm212, %vm252
    %vm269 = vmor %vm213, %vm253
    %vm270 = vmor %vm214, %vm254
    %v271 = vsel %vm255, 1, 0
    %v272 = vsel %vm256, 1, 0
    %v273 = vsel %vm257, 1, 0
    %v274 = vsel %vm258, 1, 0
    %v275 = vsel %vm259, 1, 0
    %v276 = vsel %vm260, 1, 0
    %v277 = vsel %vm261, 1, 0
    %v278 = vsel %vm262, 1, 0
    %v279 = vsel %vm263, 1, 0
    %v280 = vsel %vm264, 1, 0
    %v281 = vsel %vm265, 1, 0
    %v282 = vsel %vm266, 1, 0
    %v283 = vsel %vm267, 1, 0
    %v284 = vsel %vm268, 1, 0
    %v285 = vsel %vm269, 1, 0
    %v286 = vsel %vm270, 1, 0
    %v287 = vcvt.s32.f32 %v271
    %v288 = vcvt.s32.f32 %v272
    %v289 = vcvt.s32.f32 %v273
    %v290 = vcvt.s32.f32 %v274
    %v291 = vcvt.s32.f32 %v275
    %v292 = vcvt.s32.f32 %v276
    %v293 = vcvt.s32.f32 %v277
    %v294 = vcvt.s32.f32 %v278
    %v295 = vcvt.s32.f32 %v279
    %v296 = vcvt.s32.f32 %v280
    %v297 = vcvt.s32.f32 %v281
    %v298 = vcvt.s32.f32 %v282
    %v299 = vcvt.s32.f32 %v283
    %v300 = vcvt.s32.f32 %v284
    %v301 = vcvt.s32.f32 %v285
    %v302 = vcvt.s32.f32 %v286
    %v303 = vld [vmem:[%s1] sm:$0xff]
    %v304 = vld [vmem:[%s1 + $0x8] sm:$0xff]
    %v305 = vld [vmem:[%s1 + $0x10] sm:$0xff]
    %v306 = vld [vmem:[%s1 + $0x18] sm:$0xff]
    %v307 = vld [vmem:[%s1 + $0x20] sm:$0xff]
    %v308 = vld [vmem:[%s1 + $0x28] sm:$0xff]
    %v309 = vld [vmem:[%s1 + $0x30] sm:$0xff]
    %v310 = vld [vmem:[%s1 + $0x38] sm:$0xff]
    %v311 = vld [vmem:[%s1 + $0x40] sm:$0xff]
    %v312 = vld [vmem:[%s1 + $0x48] sm:$0xff]
    %v313 = vld [vmem:[%s1 + $0x50] sm:$0xff]
    %v314 = vld [vmem:[%s1 + $0x58] sm:$0xff]
    %v315 = vld [vmem:[%s1 + $0x60] sm:$0xff]
    %v316 = vld [vmem:[%s1 + $0x68] sm:$0xff]
    %v317 = vld [vmem:[%s1 + $0x70] sm:$0xff]
    %v318 = vld [vmem:[%s1 + $0x78] sm:$0xff]
    %v319 = vld [vmem:[%s1 + $0x80] sm:$0xff]
    %v320 = vld [vmem:[%s1 + $0x88] sm:$0xff]
    %v321 = vld [vmem:[%s1 + $0x90] sm:$0xff]
    %v322 = vld [vmem:[%s1 + $0x98] sm:$0xff]
    %v323 = vld [vmem:[%s1 + $0xa0] sm:$0xff]
    %v324 = vld [vmem:[%s1 + $0xa8] sm:$0xff]
    %v325 = vld [vmem:[%s1 + $0xb0] sm:$0xff]
    %v326 = vld [vmem:[%s1 + $0xb8] sm:$0xff]
    %v327 = vld [vmem:[%s1 + $0xc0] sm:$0xff]
    %v328 = vld [vmem:[%s1 + $0xc8] sm:$0xff]
    %v329 = vld [vmem:[%s1 + $0xd0] sm:$0xff]
    %v330 = vld [vmem:[%s1 + $0xd8] sm:$0xff]
    %v331 = vld [vmem:[%s1 + $0xe0] sm:$0xff]
    %v332 = vld [vmem:[%s1 + $0xe8] sm:$0xff]
    %v333 = vld [vmem:[%s1 + $0xf0] sm:$0xff]
    %v334 = vld [vmem:[%s1 + $0xf8] sm:$0xff]
    %v335 = vld [vmem:[%s1 + $0x100] sm:$0xff]
    %v336 = vld [vmem:[%s1 + $0x108] sm:$0xff]
    %v337 = vld [vmem:[%s1 + $0x110] sm:$0xff]
    %v338 = vld [vmem:[%s1 + $0x118] sm:$0xff]
    %v339 = vld [vmem:[%s1 + $0x120] sm:$0xff]
    %v340 = vld [vmem:[%s1 + $0x128] sm:$0xff]
    %v341 = vld [vmem:[%s1 + $0x130] sm:$0xff]
    %v342 = vld [vmem:[%s1 + $0x138] sm:$0xff]
    %v343 = vld [vmem:[%s1 + $0x140] sm:$0xff]
    %v344 = vld [vmem:[%s1 + $0x148] sm:$0xff]
    %v345 = vld [vmem:[%s1 + $0x150] sm:$0xff]
    %v346 = vld [vmem:[%s1 + $0x158] sm:$0xff]
    %v347 = vld [vmem:[%s1 + $0x160] sm:$0xff]
    %v348 = vld [vmem:[%s1 + $0x168] sm:$0xff]
    %v349 = vld [vmem:[%s1 + $0x170] sm:$0xff]
    %v350 = vld [vmem:[%s1 + $0x178] sm:$0xff]
    %v351 = vld [vmem:[%s1 + $0x180] sm:$0xff]
    %v352 = vld [vmem:[%s1 + $0x188] sm:$0xff]
    %v353 = vld [vmem:[%s1 + $0x190] sm:$0xff]
    %v354 = vld [vmem:[%s1 + $0x198] sm:$0xff]
    %v355 = vld [vmem:[%s1 + $0x1a0] sm:$0xff]
    %v356 = vld [vmem:[%s1 + $0x1a8] sm:$0xff]
    %v357 = vld [vmem:[%s1 + $0x1b0] sm:$0xff]
    %v358 = vld [vmem:[%s1 + $0x1b8] sm:$0xff]
    %v359 = vld [vmem:[%s1 + $0x1c0] sm:$0xff]
    %v360 = vld [vmem:[%s1 + $0x1c8] sm:$0xff]
    %v361 = vld [vmem:[%s1 + $0x1d0] sm:$0xff]
    %v362 = vld [vmem:[%s1 + $0x1d8] sm:$0xff]
    %v363 = vld [vmem:[%s1 + $0x1e0] sm:$0xff]
    %v364 = vld [vmem:[%s1 + $0x1e8] sm:$0xff]
    %v365 = vld [vmem:[%s1 + $0x1f0] sm:$0xff]
    %v366 = vld [vmem:[%s1 + $0x1f8] sm:$0xff]
    %v367 = vld [vmem:[%s1 + $0x200] sm:$0xff]
    %v368 = vld [vmem:[%s1 + $0x208] sm:$0xff]
    %v369 = vld [vmem:[%s1 + $0x210] sm:$0xff]
    %v370 = vld [vmem:[%s1 + $0x218] sm:$0xff]
    %v371 = vld [vmem:[%s1 + $0x220] sm:$0xff]
    %v372 = vld [vmem:[%s1 + $0x228] sm:$0xff]
    %v373 = vld [vmem:[%s1 + $0x230] sm:$0xff]
    %v374 = vld [vmem:[%s1 + $0x238] sm:$0xff]
    %v375 = vld [vmem:[%s1 + $0x240] sm:$0xff]
    %v376 = vld [vmem:[%s1 + $0x248] sm:$0xff]
    %v377 = vld [vmem:[%s1 + $0x250] sm:$0xff]
    %v378 = vld [vmem:[%s1 + $0x258] sm:$0xff]
    %v379 = vld [vmem:[%s1 + $0x260] sm:$0xff]
    %v380 = vld [vmem:[%s1 + $0x268] sm:$0xff]
    %v381 = vld [vmem:[%s1 + $0x270] sm:$0xff]
    %v382 = vld [vmem:[%s1 + $0x278] sm:$0xff]
    %v383 = vld [vmem:[%s1 + $0x280] sm:$0xff]
    %v384 = vld [vmem:[%s1 + $0x288] sm:$0xff]
    %v385 = vld [vmem:[%s1 + $0x290] sm:$0xff]
    %v386 = vld [vmem:[%s1 + $0x298] sm:$0xff]
    %v387 = vld [vmem:[%s1 + $0x2a0] sm:$0xff]
    %v388 = vld [vmem:[%s1 + $0x2a8] sm:$0xff]
    %v389 = vld [vmem:[%s1 + $0x2b0] sm:$0xff]
    %v390 = vld [vmem:[%s1 + $0x2b8] sm:$0xff]
    %vm391 = vcmask 392192
    %v393 = vsel %vm391, %v288, 0
    %v396 = vsel %vm391, %v290, 0
    %v399 = vsel %vm391, %v292, 0
    %v402 = vsel %vm391, %v294, 0
    %v405 = vsel %vm391, %v296, 0
    %v408 = vsel %vm391, %v298, 0
    %v411 = vsel %vm391, %v300, 0
    %v414 = vsel %vm391, %v302, 0
    %416 = vmatprep.subr.mxu0 %v304
    %417 = vmatpush1.msra.mxu0 %v303
    %418 = vmatprep.subr.mxu0 %v308
    %419 = vmatpush1.msra.mxu0 %v307
    %420 = vmatprep.subr.mxu0 %v312
    %421 = vmatpush1.msra.mxu0 %v311
    %422 = vmatprep.subr.mxu0 %v316
    %423 = vmatpush1.msra.mxu0 %v315
    %424 = vmatprep.subr.mxu0 %v320
    %425 = vmatpush1.msra.mxu0 %v319
    %426 = vmatprep.subr.mxu0 %v324
    %427 = vmatpush1.msra.mxu0 %v323
    %428 = vmatprep.subr.mxu0 %v328
    %429 = vmatpush1.msra.mxu0 %v327
    %430 = vmatprep.subr.mxu0 %v332
    %431 = vmatpush1.msra.mxu0 %v331
    %432 = vmatprep.subr.mxu0 %v336
    %433 = vmatpush1.msra.mxu0 %v335
    %434 = vmatprep.subr.mxu0 %v340
    %435 = vmatpush1.msra.mxu0 %v339
    %436 = vmatprep.subr.mxu0 %v344
    %437 = vmatpush1.msra.mxu0 %v343
    %438 = vmatprep.subr.mxu0 %v348
    %439 = vmatpush1.msra.mxu0 %v347
    %440 = vmatprep.subr.mxu0 %v352
    %441 = vmatpush1.msra.mxu0 %v351
    %442 = vmatprep.subr.mxu0 %v356
    %443 = vmatpush1.msra.mxu0 %v355
    %444 = vmatprep.subr.mxu0 %v360
    %445 = vmatpush1.msra.mxu0 %v359
    %446 = vmatprep.subr.mxu0 %v364
    %447 = vmatpush1.msra.mxu0 %v363
    %448 = vmatprep.subr.mxu0 %v368
    %449 = vmatpush1.msra.mxu0 %v367
    %450 = vmatprep.subr.mxu0 %v372
    %451 = vmatpush1.msra.mxu0 %v371
    %452 = vmatprep.subr.mxu0 %v376
    %453 = vmatpush1.msra.mxu0 %v375
    %454 = vmatprep.subr.mxu0 %v380
    %455 = vmatpush1.msra.mxu0 %v379
    %456 = vmatprep.subr.mxu0 %v384
    %457 = vmatpush1.msra.mxu0 %v383
    %458 = vmatprep.subr.mxu0 %v388
    %459 = vmatpush1.msra.mxu0 %v387
    %460 = vmatprep.subr.mxu0 0.0
    %461 = vmatpush1.msra.mxu0 0.0
    %462 = vmatprep.subr.mxu0 0.0
    %463 = vmatpush1.msra.mxu0 0.0
    %464 = vmatprep.subr.mxu0 0.0
    %465 = vmatpush1.msra.mxu0 0.0
    %466 = vmatprep.subr.mxu0 0.0
    %467 = vmatpush1.msra.mxu0 0.0
    %468 = vmatprep.subr.mxu0 0.0
    %469 = vmatpush1.msra.mxu0 0.0
    %470 = vmatprep.subr.mxu0 0.0
    %471 = vmatpush1.msra.mxu0 0.0
    %472 = vmatprep.subr.mxu0 0.0
    %473 = vmatpush1.msra.mxu0 0.0
    %474 = vmatprep.subr.mxu0 0.0
    %475 = vmatpush1.msra.mxu0 0.0
    %476 = vmatprep.subr.mxu0 0.0
    %477 = vmatpush1.msra.mxu0 0.0
    %478 = vmatprep.subr.mxu0 0.0
    %479 = vmatpush1.msra.mxu0 0.0
    %480 = vmatprep.mubr.f32.mxu0 %v393
    %481 = vmatmul.mubr.f32.gmra.mrb[0].mxu0 %v287
    %v482 = vpop.f32.mrb[0].mxu0
    %v483 = vadd.f32 0.0, %v482
    %v484 = vpop.f32.mrb[0].mxu0
    %v485 = vadd.f32 0.0, %v484
    %486 = vmatprep.mubr.f32.mxu0 %v396
    %487 = vmatmul.mubr.f32.gmra.mrb[0].mxu0 %v289
    %v488 = vpop.f32.mrb[0].mxu0
    %v489 = vadd.f32 0.0, %v488
    %v490 = vpop.f32.mrb[0].mxu0
    %v491 = vadd.f32 0.0, %v490
    %492 = vmatprep.mubr.f32.mxu0 %v399
    %493 = vmatmul.mubr.f32.gmra.mrb[0].mxu0 %v291
    %v494 = vpop.f32.mrb[0].mxu0
    %v495 = vadd.f32 0.0, %v494
    %v496 = vpop.f32.mrb[0].mxu0
    %v497 = vadd.f32 0.0, %v496
    %498 = vmatprep.mubr.f32.mxu0 %v402
    %499 = vmatmul.mubr.f32.gmra.mrb[0].mxu0 %v293
    %v500 = vpop.f32.mrb[0].mxu0
    %v501 = vadd.f32 0.0, %v500
    %v502 = vpop.f32.mrb[0].mxu0
    %v503 = vadd.f32 0.0, %v502
    %504 = vmatprep.mubr.f32.mxu0 %v405
    %505 = vmatmul.mubr.f32.gmra.mrb[0].mxu0 %v295
    %v506 = vpop.f32.mrb[0].mxu0
    %v507 = vadd.f32 0.0, %v506
    %v508 = vpop.f32.mrb[0].mxu0
    %v509 = vadd.f32 0.0, %v508
    %510 = vmatprep.mubr.f32.mxu0 %v408
    %511 = vmatmul.mubr.f32.gmra.mrb[0].mxu0 %v297
    %v512 = vpop.f32.mrb[0].mxu0
    %v513 = vadd.f32 0.0, %v512
    %v514 = vpop.f32.mrb[0].mxu0
    %v515 = vadd.f32 0.0, %v514
    %516 = vmatprep.mubr.f32.mxu0 %v411
    %517 = vmatmul.mubr.f32.gmra.mrb[0].mxu0 %v299
    %v518 = vpop.f32.mrb[0].mxu0
    %v519 = vadd.f32 0.0, %v518
    %v520 = vpop.f32.mrb[0].mxu0
    %v521 = vadd.f32 0.0, %v520
    %522 = vmatprep.mubr.f32.mxu0 %v414
    %523 = vmatmul.mubr.f32.gmra.mrb[0].mxu0 %v301
    %v524 = vpop.f32.mrb[0].mxu0
    %v525 = vadd.f32 0.0, %v524
    %v526 = vpop.f32.mrb[0].mxu0
    %v527 = vadd.f32 0.0, %v526
    %528 = vdwg.mxu0
    %529 = vmatprep.subr.mxu0 %v306
    %530 = vmatpush1.msra.mxu0 %v305
    %531 = vmatprep.subr.mxu0 %v310
    %532 = vmatpush1.msra.mxu0 %v309
    %533 = vmatprep.subr.mxu0 %v314
    %534 = vmatpush1.msra.mxu0 %v313
    %535 = vmatprep.subr.mxu0 %v318
    %536 = vmatpush1.msra.mxu0 %v317
    %537 = vmatprep.subr.mxu0 %v322
    %538 = vmatpush1.msra.mxu0 %v321
    %539 = vmatprep.subr.mxu0 %v326
    %540 = vmatpush1.msra.mxu0 %v325
    %541 = vmatprep.subr.mxu0 %v330
    %542 = vmatpush1.msra.mxu0 %v329
    %543 = vmatprep.subr.mxu0 %v334
    %544 = vmatpush1.msra.mxu0 %v333
    %545 = vmatprep.subr.mxu0 %v338
    %546 = vmatpush1.msra.mxu0 %v337
    %547 = vmatprep.subr.mxu0 %v342
    %548 = vmatpush1.msra.mxu0 %v341
    %549 = vmatprep.subr.mxu0 %v346
    %550 = vmatpush1.msra.mxu0 %v345
    %551 = vmatprep.subr.mxu0 %v350
    %552 = vmatpush1.msra.mxu0 %v349
    %553 = vmatprep.subr.mxu0 %v354
    %554 = vmatpush1.msra.mxu0 %v353
    %555 = vmatprep.subr.mxu0 %v358
    %556 = vmatpush1.msra.mxu0 %v357
    %557 = vmatprep.subr.mxu0 %v362
    %558 = vmatpush1.msra.mxu0 %v361
    %559 = vmatprep.subr.mxu0 %v366
    %560 = vmatpush1.msra.mxu0 %v365
    %561 = vmatprep.subr.mxu0 %v370
    %562 = vmatpush1.msra.mxu0 %v369
    %563 = vmatprep.subr.mxu0 %v374
    %564 = vmatpush1.msra.mxu0 %v373
    %565 = vmatprep.subr.mxu0 %v378
    %566 = vmatpush1.msra.mxu0 %v377
    %567 = vmatprep.subr.mxu0 %v382
    %568 = vmatpush1.msra.mxu0 %v381
    %569 = vmatprep.subr.mxu0 %v386
    %570 = vmatpush1.msra.mxu0 %v385
    %571 = vmatprep.subr.mxu0 %v390
    %572 = vmatpush1.msra.mxu0 %v389
    %573 = vmatprep.subr.mxu0 0.0
    %574 = vmatpush1.msra.mxu0 0.0
    %575 = vmatprep.subr.mxu0 0.0
    %576 = vmatpush1.msra.mxu0 0.0
    %577 = vmatprep.subr.mxu0 0.0
    %578 = vmatpush1.msra.mxu0 0.0
    %579 = vmatprep.subr.mxu0 0.0
    %580 = vmatpush1.msra.mxu0 0.0
    %581 = vmatprep.subr.mxu0 0.0
    %582 = vmatpush1.msra.mxu0 0.0
    %583 = vmatprep.subr.mxu0 0.0
    %584 = vmatpush1.msra.mxu0 0.0
    %585 = vmatprep.subr.mxu0 0.0
    %586 = vmatpush1.msra.mxu0 0.0
    %587 = vmatprep.subr.mxu0 0.0
    %588 = vmatpush1.msra.mxu0 0.0
    %589 = vmatprep.subr.mxu0 0.0
    %590 = vmatpush1.msra.mxu0 0.0
    %591 = vmatprep.subr.mxu0 0.0
    %592 = vmatpush1.msra.mxu0 0.0
    %593 = vmatprep.mubr.f32.mxu0 %v393
    %594 = vmatmul.mubr.f32.gmra.mrb[0].mxu0 %v287
    %v595 = vpop.f32.mrb[0].mxu0
    %v596 = vadd.f32 0.0, %v595
    %v597 = vpop.f32.mrb[0].mxu0
    %v598 = vadd.f32 0.0, %v597
    %599 = vmatprep.mubr.f32.mxu0 %v396
    %600 = vmatmul.mubr.f32.gmra.mrb[0].mxu0 %v289
    %v601 = vpop.f32.mrb[0].mxu0
    %v602 = vadd.f32 0.0, %v601
    %v603 = vpop.f32.mrb[0].mxu0
    %v604 = vadd.f32 0.0, %v603
    %605 = vmatprep.mubr.f32.mxu0 %v399
    %606 = vmatmul.mubr.f32.gmra.mrb[0].mxu0 %v291
    %v607 = vpop.f32.mrb[0].mxu0
    %v608 = vadd.f32 0.0, %v607
    %v609 = vpop.f32.mrb[0].mxu0
    %v610 = vadd.f32 0.0, %v609
    %611 = vmatprep.mubr.f32.mxu0 %v402
    %612 = vmatmul.mubr.f32.gmra.mrb[0].mxu0 %v293
    %v613 = vpop.f32.mrb[0].mxu0
    %v614 = vadd.f32 0.0, %v613
    %v615 = vpop.f32.mrb[0].mxu0
    %v616 = vadd.f32 0.0, %v615
    %617 = vmatprep.mubr.f32.mxu0 %v405
    %618 = vmatmul.mubr.f32.gmra.mrb[0].mxu0 %v295
    %v619 = vpop.f32.mrb[0].mxu0
    %v620 = vadd.f32 0.0, %v619
    %v621 = vpop.f32.mrb[0].mxu0
    %v622 = vadd.f32 0.0, %v621
    %623 = vmatprep.mubr.f32.mxu0 %v408
    %624 = vmatmul.mubr.f32.gmra.mrb[0].mxu0 %v297
    %v625 = vpop.f32.mrb[0].mxu0
    %v626 = vadd.f32 0.0, %v625
    %v627 = vpop.f32.mrb[0].mxu0
    %v628 = vadd.f32 0.0, %v627
    %629 = vmatprep.mubr.f32.mxu0 %v411
    %630 = vmatmul.mubr.f32.gmra.mrb[0].mxu0 %v299
    %v631 = vpop.f32.mrb[0].mxu0
    %v632 = vadd.f32 0.0, %v631
    %v633 = vpop.f32.mrb[0].mxu0
    %v634 = vadd.f32 0.0, %v633
    %635 = vmatprep.mubr.f32.mxu0 %v414
    %636 = vmatmul.mubr.f32.gmra.mrb[0].mxu0 %v301
    %v637 = vpop.f32.mrb[0].mxu0
    %v638 = vadd.f32 0.0, %v637
    %v639 = vpop.f32.mrb[0].mxu0
    %v640 = vadd.f32 0.0, %v639
    %641 = vdwg.mxu0
    %v642 = vmax.f32 %v483, 0.0
    %v643 = vmax.f32 %v485, 0.0
    %v644 = vmax.f32 %v596, 0.0
    %v645 = vmax.f32 %v598, 0.0
    %v646 = vmax.f32 %v489, 0.0
    %v647 = vmax.f32 %v491, 0.0
    %v648 = vmax.f32 %v602, 0.0
    %v649 = vmax.f32 %v604, 0.0
    %v650 = vmax.f32 %v495, 0.0
    %v651 = vmax.f32 %v497, 0.0
    %v652 = vmax.f32 %v608, 0.0
    %v653 = vmax.f32 %v610, 0.0
    %v654 = vmax.f32 %v501, 0.0
    %v655 = vmax.f32 %v503, 0.0
    %v656 = vmax.f32 %v614, 0.0
    %v657 = vmax.f32 %v616, 0.0
    %v658 = vmax.f32 %v507, 0.0
    %v659 = vmax.f32 %v509, 0.0
    %v660 = vmax.f32 %v620, 0.0
    %v661 = vmax.f32 %v622, 0.0
    %v662 = vmax.f32 %v513, 0.0
    %v663 = vmax.f32 %v515, 0.0
    %v664 = vmax.f32 %v626, 0.0
    %v665 = vmax.f32 %v628, 0.0
    %v666 = vmax.f32 %v519, 0.0
    %v667 = vmax.f32 %v521, 0.0
    %v668 = vmax.f32 %v632, 0.0
    %v669 = vmax.f32 %v634, 0.0
    %v670 = vmax.f32 %v525, 0.0
    %v671 = vmax.f32 %v527, 0.0
    %v672 = vmax.f32 %v638, 0.0
    %v673 = vmax.f32 %v640, 0.0
    %v674 = vld [vmem:[#allocation2] sm:$0xff]
    %v675 = vld [vmem:[#allocation2 + $0x8] sm:$0xff]
    %v676 = vld [vmem:[#allocation2 + $0x10] sm:$0xff]
    %v677 = vld [vmem:[#allocation2 + $0x18] sm:$0xff]
    %v678 = vld [vmem:[#allocation2 + $0x20] sm:$0xff]
    %v679 = vld [vmem:[#allocation2 + $0x28] sm:$0xff]
    %v680 = vld [vmem:[#allocation2 + $0x30] sm:$0xff]
    %v681 = vld [vmem:[#allocation2 + $0x38] sm:$0xff]
    %v682 = vld [vmem:[#allocation2 + $0x40] sm:$0xff]
    %v683 = vld [vmem:[#allocation2 + $0x48] sm:$0xff]
    %v684 = vld [vmem:[#allocation2 + $0x50] sm:$0xff]
    %v685 = vld [vmem:[#allocation2 + $0x58] sm:$0xff]
    %v686 = vld [vmem:[#allocation2 + $0x60] sm:$0xff]
    %v687 = vld [vmem:[#allocation2 + $0x68] sm:$0xff]
    %v688 = vld [vmem:[#allocation2 + $0x70] sm:$0xff]
    %v689 = vld [vmem:[#allocation2 + $0x78] sm:$0xff]
    %v690 = vmul.f32 %v642, %v674
    %v691 = vmul.f32 %v643, %v675
    %v692 = vmul.f32 %v644, %v676
    %v693 = vmul.f32 %v645, %v677
    %v694 = vmul.f32 %v646, %v678
    %v695 = vmul.f32 %v647, %v679
    %v696 = vmul.f32 %v648, %v680
    %v697 = vmul.f32 %v649, %v681
    %v698 = vmul.f32 %v650, %v682
    %v699 = vmul.f32 %v651, %v683
    %v700 = vmul.f32 %v652, %v684
    %v701 = vmul.f32 %v653, %v685
    %v702 = vmul.f32 %v654, %v686
    %v703 = vmul.f32 %v655, %v687
    %v704 = vmul.f32 %v656, %v688
    %v705 = vmul.f32 %v657, %v689
    %v706 = vmul.f32 %v658, %v674
    %v707 = vmul.f32 %v659, %v675
    %v708 = vmul.f32 %v660, %v676
    %v709 = vmul.f32 %v661, %v677
    %v710 = vmul.f32 %v662, %v678
    %v711 = vmul.f32 %v663, %v679
    %v712 = vmul.f32 %v664, %v680
    %v713 = vmul.f32 %v665, %v681
    %v714 = vmul.f32 %v666, %v682
    %v715 = vmul.f32 %v667, %v683
    %v716 = vmul.f32 %v668, %v684
    %v717 = vmul.f32 %v669, %v685
    %v718 = vmul.f32 %v670, %v686
    %v719 = vmul.f32 %v671, %v687
    %v720 = vmul.f32 %v672, %v688
    %v721 = vmul.f32 %v673, %v689
    %v722 = vmax.f32 %v690, %v694
    %v723 = vmax.f32 %v722, %v698
    %v724 = vmax.f32 %v723, %v702
    %v725 = vrot.slane %v724, 4
    %v726 = vmax.f32 %v724, %v725
    %v727 = vrot.slane %v726, 2
    %v728 = vmax.f32 %v726, %v727
    %v729 = vrot.slane %v728, 1
    %v730 = vmax.f32 %v728, %v729
    %v731 = vmax.f32 %v691, %v695
    %v732 = vmax.f32 %v731, %v699
    %v733 = vmax.f32 %v732, %v703
    %v734 = vrot.slane %v733, 4
    %v735 = vmax.f32 %v733, %v734
    %v736 = vrot.slane %v735, 2
    %v737 = vmax.f32 %v735, %v736
    %v738 = vrot.slane %v737, 1
    %v739 = vmax.f32 %v737, %v738
    %v740 = vmax.f32 %v692, %v696
    %v741 = vmax.f32 %v740, %v700
    %v742 = vmax.f32 %v741, %v704
    %v743 = vrot.slane %v742, 4
    %v744 = vmax.f32 %v742, %v743
    %v745 = vrot.slane %v744, 2
    %v746 = vmax.f32 %v744, %v745
    %v747 = vrot.slane %v746, 1
    %v748 = vmax.f32 %v746, %v747
    %vm749 = vcmask 130048
    %v750 = vsel %vm749, %v693, -inf
    %v751 = vsel %vm749, %v697, -inf
    %v752 = vmax.f32 %v750, %v751
    %v753 = vsel %vm749, %v701, -inf
    %v754 = vmax.f32 %v752, %v753
    %v755 = vsel %vm749, %v705, -inf
    %v756 = vmax.f32 %v754, %v755
    %v757 = vrot.slane %v756, 4
    %v758 = vmax.f32 %v756, %v757
    %v759 = vrot.slane %v758, 2
    %v760 = vmax.f32 %v758, %v759
    %v761 = vrot.slane %v760, 1
    %v762 = vmax.f32 %v760, %v761
    %v763 = vmax.f32 %v706, %v710
    %v764 = vmax.f32 %v763, %v714
    %v765 = vmax.f32 %v764, %v718
    %v766 = vrot.slane %v765, 4
    %v767 = vmax.f32 %v765, %v766
    %v768 = vrot.slane %v767, 2
    %v769 = vmax.f32 %v767, %v768
    %v770 = vrot.slane %v769, 1
    %v771 = vmax.f32 %v769, %v770
    %v772 = vmax.f32 %v707, %v711
    %v773 = vmax.f32 %v772, %v715
    %v774 = vmax.f32 %v773, %v719
    %v775 = vrot.slane %v774, 4
    %v776 = vmax.f32 %v774, %v775
    %v777 = vrot.slane %v776, 2
    %v778 = vmax.f32 %v776, %v777
    %v779 = vrot.slane %v778, 1
    %v780 = vmax.f32 %v778, %v779
    %v781 = vmax.f32 %v708, %v712
    %v782 = vmax.f32 %v781, %v716
    %v783 = vmax.f32 %v782, %v720
    %v784 = vrot.slane %v783, 4
    %v785 = vmax.f32 %v783, %v784
    %v786 = vrot.slane %v785, 2
    %v787 = vmax.f32 %v785, %v786
    %v788 = vrot.slane %v787, 1
    %v789 = vmax.f32 %v787, %v788
    %v790 = vsel %vm749, %v709, -inf
    %v791 = vsel %vm749, %v713, -inf
    %v792 = vmax.f32 %v790, %v791
    %v793 = vsel %vm749, %v717, -inf
    %v794 = vmax.f32 %v792, %v793
    %v795 = vsel %vm749, %v721, -inf
    %v796 = vmax.f32 %v794, %v795
    %v797 = vrot.slane %v796, 4
    %v798 = vmax.f32 %v796, %v797
    %v799 = vrot.slane %v798, 2
    %v800 = vmax.f32 %v798, %v799
    %v801 = vrot.slane %v800, 1
    %v802 = vmax.f32 %v800, %v801
    %v803 = vld [vmem:[%s3] sm:$0xff]
    %v804 = vld [vmem:[%s3 + $0x8] sm:$0xff]
    %v805 = vld [vmem:[%s3 + $0x10] sm:$0xff]
    %v806 = vld [vmem:[%s3 + $0x18] sm:$0xff]
    %v807 = vld [vmem:[%s3 + $0x20] sm:$0xff]
    %v808 = vld [vmem:[%s3 + $0x28] sm:$0xff]
    %v809 = vld [vmem:[%s3 + $0x30] sm:$0xff]
    %v810 = vld [vmem:[%s3 + $0x38] sm:$0xff]
    %v811 = vld [vmem:[%s3 + $0x40] sm:$0xff]
    %v812 = vld [vmem:[%s3 + $0x48] sm:$0xff]
    %v813 = vld [vmem:[%s3 + $0x50] sm:$0xff]
    %v814 = vld [vmem:[%s3 + $0x58] sm:$0xff]
    %v815 = vld [vmem:[%s3 + $0x60] sm:$0xff]
    %v816 = vld [vmem:[%s3 + $0x68] sm:$0xff]
    %v817 = vld [vmem:[%s3 + $0x70] sm:$0xff]
    %v818 = vld [vmem:[%s3 + $0x78] sm:$0xff]
    %v819 = vld [vmem:[%s3 + $0x80] sm:$0xff]
    %v820 = vld [vmem:[%s3 + $0x88] sm:$0xff]
    %v821 = vld [vmem:[%s3 + $0x90] sm:$0xff]
    %v822 = vld [vmem:[%s3 + $0x98] sm:$0xff]
    %v823 = vld [vmem:[%s3 + $0xa0] sm:$0xff]
    %v824 = vld [vmem:[%s3 + $0xa8] sm:$0xff]
    %v825 = vld [vmem:[%s3 + $0xb0] sm:$0xff]
    %v826 = vld [vmem:[%s3 + $0xb8] sm:$0xff]
    %v827 = vld [vmem:[%s3 + $0xc0] sm:$0xff]
    %v828 = vld [vmem:[%s3 + $0xc8] sm:$0xff]
    %v829 = vld [vmem:[%s3 + $0xd0] sm:$0xff]
    %v830 = vld [vmem:[%s3 + $0xd8] sm:$0xff]
    %v831 = vld [vmem:[%s3 + $0xe0] sm:$0xff]
    %v832 = vld [vmem:[%s3 + $0xe8] sm:$0xff]
    %v833 = vld [vmem:[%s3 + $0xf0] sm:$0xff]
    %v834 = vld [vmem:[%s3 + $0xf8] sm:$0xff]
    %v835 = vld [vmem:[%s3 + $0x100] sm:$0xff]
    %v836 = vld [vmem:[%s3 + $0x108] sm:$0xff]
    %v837 = vld [vmem:[%s3 + $0x110] sm:$0xff]
    %v838 = vld [vmem:[%s3 + $0x118] sm:$0xff]
    %v839 = vld [vmem:[%s3 + $0x120] sm:$0xff]
    %v840 = vld [vmem:[%s3 + $0x128] sm:$0xff]
    %v841 = vld [vmem:[%s3 + $0x130] sm:$0xff]
    %v842 = vld [vmem:[%s3 + $0x138] sm:$0xff]
    %v843 = vld [vmem:[%s3 + $0x140] sm:$0xff]
    %v844 = vld [vmem:[%s3 + $0x148] sm:$0xff]
    %v845 = vld [vmem:[%s3 + $0x150] sm:$0xff]
    %v846 = vld [vmem:[%s3 + $0x158] sm:$0xff]
    %v847 = vld [vmem:[%s3 + $0x160] sm:$0xff]
    %v848 = vld [vmem:[%s3 + $0x168] sm:$0xff]
    %v849 = vld [vmem:[%s3 + $0x170] sm:$0xff]
    %v850 = vld [vmem:[%s3 + $0x178] sm:$0xff]
    %v851 = vld [vmem:[%s3 + $0x180] sm:$0xff]
    %v852 = vld [vmem:[%s3 + $0x188] sm:$0xff]
    %v853 = vld [vmem:[%s4] sm:$0x1]
    %v854 = vlaneseq
    %v855 = vshrl.u32 %v854, 7
    %v856 = vsub.s32 0, %v855
    %v857 = vrot.slane %v853, %v856
    %vm866 = vcmask 1041409
    %v867 = vsel %vm866, %v771, %v730
    %v868 = vsel %vm866, %v780, %v739
    %v869 = vsel %vm866, %v789, %v748
    %v870 = vsel %vm866, %v802, %v762
    %v874 = vsel %vm749, %v870, 0
    %876 = vmatprep.subr.mxu0 0.0
    %877 = vmatpush1.msra.mxu0 %v803
    %878 = vmatprep.subr.mxu0 0.0
    %879 = vmatpush1.msra.mxu0 %v804
    %880 = vmatprep.subr.mxu0 0.0
    %881 = vmatpush1.msra.mxu0 %v805
    %882 = vmatprep.subr.mxu0 0.0
    %883 = vmatpush1.msra.mxu0 %v806
    %884 = vmatprep.subr.mxu0 0.0
    %885 = vmatpush1.msra.mxu0 %v807
    %886 = vmatprep.subr.mxu0 0.0
    %887 = vmatpush1.msra.mxu0 %v808
    %888 = vmatprep.subr.mxu0 0.0
    %889 = vmatpush1.msra.mxu0 %v809
    %890 = vmatprep.subr.mxu0 0.0
    %891 = vmatpush1.msra.mxu0 %v810
    %892 = vmatprep.subr.mxu0 0.0
    %893 = vmatpush1.msra.mxu0 %v811
    %894 = vmatprep.subr.mxu0 0.0
    %895 = vmatpush1.msra.mxu0 %v812
    %896 = vmatprep.subr.mxu0 0.0
    %897 = vmatpush1.msra.mxu0 %v813
    %898 = vmatprep.subr.mxu0 0.0
    %899 = vmatpush1.msra.mxu0 %v814
    %900 = vmatprep.subr.mxu0 0.0
    %901 = vmatpush1.msra.mxu0 %v815
    %902 = vmatprep.subr.mxu0 0.0
    %903 = vmatpush1.msra.mxu0 %v816
    %904 = vmatprep.subr.mxu0 0.0
    %905 = vmatpush1.msra.mxu0 %v817
    %906 = vmatprep.subr.mxu0 0.0
    %907 = vmatpush1.msra.mxu0 %v818
    %908 = vmatprep.subr.mxu0 0.0
    %909 = vmatpush1.msra.mxu0 %v819
    %910 = vmatprep.subr.mxu0 0.0
    %911 = vmatpush1.msra.mxu0 %v820
    %912 = vmatprep.subr.mxu0 0.0
    %913 = vmatpush1.msra.mxu0 %v821
    %914 = vmatprep.subr.mxu0 0.0
    %915 = vmatpush1.msra.mxu0 %v822
    %916 = vmatprep.subr.mxu0 0.0
    %917 = vmatpush1.msra.mxu0 %v823
    %918 = vmatprep.subr.mxu0 0.0
    %919 = vmatpush1.msra.mxu0 %v824
    %920 = vmatprep.subr.mxu0 0.0
    %921 = vmatpush1.msra.mxu0 %v825
    %922 = vmatprep.subr.mxu0 0.0
    %923 = vmatpush1.msra.mxu0 %v826
    %924 = vmatprep.subr.mxu0 0.0
    %925 = vmatpush1.msra.mxu0 %v827
    %926 = vmatprep.subr.mxu0 0.0
    %927 = vmatpush1.msra.mxu0 %v828
    %928 = vmatprep.subr.mxu0 0.0
    %929 = vmatpush1.msra.mxu0 %v829
    %930 = vmatprep.subr.mxu0 0.0
    %931 = vmatpush1.msra.mxu0 %v830
    %932 = vmatprep.subr.mxu0 0.0
    %933 = vmatpush1.msra.mxu0 %v831
    %934 = vmatprep.subr.mxu0 0.0
    %935 = vmatpush1.msra.mxu0 %v832
    %936 = vmatprep.subr.mxu0 0.0
    %937 = vmatpush1.msra.mxu0 %v833
    %938 = vmatprep.subr.mxu0 0.0
    %939 = vmatpush1.msra.mxu0 %v834
    %940 = vmatprep.mubr.f32.mxu0 %v868
    %941 = vmatmul.mubr.f32.gmra.mrb[0].mxu0 %v867
    %v942 = vpop.f32.mrb[0].mxu0
    %v943 = vadd.f32 %v857, %v942
    %v944 = vpop.f32.mrb[0].mxu0
    %945 = vdwg.mxu0
    %946 = vmatprep.subr.mxu0 0.0
    %947 = vmatpush1.msra.mxu0 %v835
    %948 = vmatprep.subr.mxu0 0.0
    %949 = vmatpush1.msra.mxu0 %v836
    %950 = vmatprep.subr.mxu0 0.0
    %951 = vmatpush1.msra.mxu0 %v837
    %952 = vmatprep.subr.mxu0 0.0
    %953 = vmatpush1.msra.mxu0 %v838
    %954 = vmatprep.subr.mxu0 0.0
    %955 = vmatpush1.msra.mxu0 %v839
    %956 = vmatprep.subr.mxu0 0.0
    %957 = vmatpush1.msra.mxu0 %v840
    %958 = vmatprep.subr.mxu0 0.0
    %959 = vmatpush1.msra.mxu0 %v841
    %960 = vmatprep.subr.mxu0 0.0
    %961 = vmatpush1.msra.mxu0 %v842
    %962 = vmatprep.subr.mxu0 0.0
    %963 = vmatpush1.msra.mxu0 %v843
    %964 = vmatprep.subr.mxu0 0.0
    %965 = vmatpush1.msra.mxu0 %v844
    %966 = vmatprep.subr.mxu0 0.0
    %967 = vmatpush1.msra.mxu0 %v845
    %968 = vmatprep.subr.mxu0 0.0
    %969 = vmatpush1.msra.mxu0 %v846
    %970 = vmatprep.subr.mxu0 0.0
    %971 = vmatpush1.msra.mxu0 %v847
    %972 = vmatprep.subr.mxu0 0.0
    %973 = vmatpush1.msra.mxu0 %v848
    %974 = vmatprep.subr.mxu0 0.0
    %975 = vmatpush1.msra.mxu0 %v849
    %976 = vmatprep.subr.mxu0 0.0
    %977 = vmatpush1.msra.mxu0 %v850
    %978 = vmatprep.subr.mxu0 0.0
    %979 = vmatpush1.msra.mxu0 %v851
    %980 = vmatprep.subr.mxu0 0.0
    %981 = vmatpush1.msra.mxu0 %v852
    %982 = vmatprep.subr.mxu0 0.0
    %983 = vmatpush1.msra.mxu0 0.0
    %984 = vmatprep.subr.mxu0 0.0
    %985 = vmatpush1.msra.mxu0 0.0
    %986 = vmatprep.subr.mxu0 0.0
    %987 = vmatpush1.msra.mxu0 0.0
    %988 = vmatprep.subr.mxu0 0.0
    %989 = vmatpush1.msra.mxu0 0.0
    %990 = vmatprep.subr.mxu0 0.0
    %991 = vmatpush1.msra.mxu0 0.0
    %992 = vmatprep.subr.mxu0 0.0
    %993 = vmatpush1.msra.mxu0 0.0
    %994 = vmatprep.subr.mxu0 0.0
    %995 = vmatpush1.msra.mxu0 0.0
    %996 = vmatprep.subr.mxu0 0.0
    %997 = vmatpush1.msra.mxu0 0.0
    %998 = vmatprep.subr.mxu0 0.0
    %999 = vmatpush1.msra.mxu0 0.0
    %1000 = vmatprep.subr.mxu0 0.0
    %1001 = vmatpush1.msra.mxu0 0.0
    %1002 = vmatprep.subr.mxu0 0.0
    %1003 = vmatpush1.msra.mxu0 0.0
    %1004 = vmatprep.subr.mxu0 0.0
    %1005 = vmatpush1.msra.mxu0 0.0
    %1006 = vmatprep.subr.mxu0 0.0
    %1007 = vmatpush1.msra.mxu0 0.0
    %1008 = vmatprep.subr.mxu0 0.0
    %1009 = vmatpush1.msra.mxu0 0.0
    %1010 = vmatprep.mubr.f32.mxu0 %v874
    %1011 = vmatmul.mubr.f32.gmra.mrb[0].mxu0 %v869
    %v1012 = vpop.f32.mrb[0].mxu0
    %v1013 = vadd.f32 %v943, %v1012
    %v1014 = vpop.f32.mrb[0].mxu0
    %1015 = vdwg.mxu0
    %v1016 = vmax.f32 %v1013, 0.0
    %v1017 = vld [vmem:[#allocation5] sm:$0xff]
    %v1018 = vld [vmem:[#allocation5 + $0x8] sm:$0xff]
    %v1019 = vld [vmem:[#allocation5 + $0x10] sm:$0xff]
    %v1020 = vld [vmem:[#allocation5 + $0x18] sm:$0xff]
    %v1021 = vld [vmem:[#allocation5 + $0x20] sm:$0xff]
    %v1022 = vld [vmem:[#allocation5 + $0x28] sm:$0xff]
    %v1023 = vld [vmem:[#allocation5 + $0x30] sm:$0xff]
    %v1024 = vld [vmem:[#allocation5 + $0x38] sm:$0xff]
    %v1025 = vld [vmem:[%s4 + $0x1] sm:$0x1]
    %v1026 = vlaneseq
    %v1027 = vshrl.u32 %v1026, 7
    %v1028 = vsub.s32 0, %v1027
    %v1029 = vrot.slane %v1025, %v1028
    %vm1030 = vcmask 523264
    %v1032 = vsel %vm1030, %v1016, 0
    %1034 = vmatprep.subr.mxu0 0.0
    %1035 = vmatpush1.msra.mxu0 %v1017
    %1036 = vmatprep.subr.mxu0 0.0
    %1037 = vmatpush1.msra.mxu0 %v1018
    %1038 = vmatprep.subr.mxu0 0.0
    %1039 = vmatpush1.msra.mxu0 %v1019
    %1040 = vmatprep.subr.mxu0 0.0
    %1041 = vmatpush1.msra.mxu0 %v1020
    %1042 = vmatprep.subr.mxu0 0.0
    %1043 = vmatpush1.msra.mxu0 %v1021
    %1044 = vmatprep.subr.mxu0 0.0
    %1045 = vmatpush1.msra.mxu0 %v1022
    %1046 = vmatprep.subr.mxu0 0.0
    %1047 = vmatpush1.msra.mxu0 %v1023
    %1048 = vmatprep.subr.mxu0 0.0
    %1049 = vmatpush1.msra.mxu0 %v1024
    %1050 = vmatprep.subr.mxu0 0.0
    %1051 = vmatpush1.msra.mxu0 0.0
    %1052 = vmatprep.subr.mxu0 0.0
    %1053 = vmatpush1.msra.mxu0 0.0
    %1054 = vmatprep.subr.mxu0 0.0
    %1055 = vmatpush1.msra.mxu0 0.0
    %1056 = vmatprep.subr.mxu0 0.0
    %1057 = vmatpush1.msra.mxu0 0.0
    %1058 = vmatprep.subr.mxu0 0.0
    %1059 = vmatpush1.msra.mxu0 0.0
    %1060 = vmatprep.subr.mxu0 0.0
    %1061 = vmatpush1.msra.mxu0 0.0
    %1062 = vmatprep.subr.mxu0 0.0
    %1063 = vmatpush1.msra.mxu0 0.0
    %1064 = vmatprep.subr.mxu0 0.0
    %1065 = vmatpush1.msra.mxu0 0.0
    %1066 = vmatprep.subr.mxu0 0.0
    %1067 = vmatpush1.msra.mxu0 0.0
    %1068 = vmatprep.subr.mxu0 0.0
    %1069 = vmatpush1.msra.mxu0 0.0
    %1070 = vmatprep.subr.mxu0 0.0
    %1071 = vmatpush1.msra.mxu0 0.0
    %1072 = vmatprep.subr.mxu0 0.0
    %1073 = vmatpush1.msra.mxu0 0.0
    %1074 = vmatprep.subr.mxu0 0.0
    %1075 = vmatpush1.msra.mxu0 0.0
    %1076 = vmatprep.subr.mxu0 0.0
    %1077 = vmatpush1.msra.mxu0 0.0
    %1078 = vmatprep.subr.mxu0 0.0
    %1079 = vmatpush1.msra.mxu0 0.0
    %1080 = vmatprep.subr.mxu0 0.0
    %1081 = vmatpush1.msra.mxu0 0.0
    %1082 = vmatprep.subr.mxu0 0.0
    %1083 = vmatpush1.msra.mxu0 0.0
    %1084 = vmatprep.subr.mxu0 0.0
    %1085 = vmatpush1.msra.mxu0 0.0
    %1086 = vmatprep.subr.mxu0 0.0
    %1087 = vmatpush1.msra.mxu0 0.0
    %1088 = vmatprep.subr.mxu0 0.0
    %1089 = vmatpush1.msra.mxu0 0.0
    %1090 = vmatprep.subr.mxu0 0.0
    %1091 = vmatpush1.msra.mxu0 0.0
    %1092 = vmatprep.subr.mxu0 0.0
    %1093 = vmatpush1.msra.mxu0 0.0
    %1094 = vmatprep.subr.mxu0 0.0
    %1095 = vmatpush1.msra.mxu0 0.0
    %1096 = vmatprep.subr.mxu0 0.0
    %1097 = vmatpush1.msra.mxu0 0.0
    %1098 = vmatprep.mubr.f32.mxu0 0.0
    %1099 = vmatmul.mubr.f32.gmra.mrb[0].mxu0 %v1032
    %v1100 = vpop.f32.mrb[0].mxu0
    %v1101 = vadd.f32 %v1029, %v1100
    %v1102 = vpop.f32.mrb[0].mxu0
    %1103 = vdwg.mxu0
    %1104 = vst [vmem:[#allocation7] sm:$0x3] %v1101
    // Predicated region
    $region34: #{tpu_custom_call.1} parent=1 // pred_check
      _
    $region35: #{tpu_custom_call.1} parent=1 // pred_check_branch
      %1106 = sbr.rel (0) target = $region37
    $region36: #{tpu_custom_call.1} parent=1 // pred_region
      %s1108 = ssub.s32 32, 32
      %1109 = vsyncadd [#allocation4], %s1108
      %s1111 = sshll.u32 [#allocation7], 4
      %s1112 = int_to_ptr.vmem [resolvable:$true] %s1111
      %1114 = dma.vmem_to_hbm [thread:$0]  %s1112, 32, %s6, [#allocation4]
    $region37: #{tpu_custom_call.1} parent=1 // pred_fallthru
      _
    // Predicated region
    $region38: #{tpu_custom_call.1} parent=1 // pred_check
      _
    $region39: #{tpu_custom_call.1} parent=1 // pred_check_branch
      %1116 = sbr.rel (0) target = $region41
    $region40: #{tpu_custom_call.1} parent=1 // pred_region
      %1117 = dma.done [#allocation4], 32
    $region41: #{tpu_custom_call.1} parent=1 // pred_fallthru
      _
    %1118 = vsyncpa [#allocation3], 1
    %1119 = vsyncpa [#allocation6], 1
    %1120 = vsyncpa [#allocation4], 1

</llo_original>
